<compile_context>
chip_gen: v5e
topology: v5e:2x2
jax: 0.10.0
libtpu: 0.0.40
codegen_flags: <defaults>
</compile_context>

<pallas_src>
import functools

import jax
import jax.numpy as jnp
from jax import lax
from jax.experimental import pallas as pl
from jax.experimental.pallas import tpu as pltpu

MAX_PAD = 3  # largest dilation/padding among the three branches


def inception_kernel(x_ref, w_ref, b_ref, o_ref, *, wp, span):
  # x_ref: (1, c_in, Hp*Wp)      bf16  flattened padded image, one batch elem
  # w_ref: (1, c_out, 9*c_in)    bf16  this branch's weights, (kh,kw)-major
  # b_ref: (1, c_out, 1)         f32   this branch's bias
  # o_ref: (1, 1, c_out, span)   f32   lane-dense output slab for this branch
  br = pl.program_id(1)
  base = MAX_PAD * wp + MAX_PAD

  def run_branch(d):
    cols = []
    for kh in range(3):
      for kw in range(3):
        off = base + d * (kh - 1) * wp + d * (kw - 1)   # static int
        cols.append(x_ref[0, :, off:off + span])        # (c_in, span) bf16
    xcol = jnp.concatenate(cols, axis=0)                # (9*c_in, span) bf16
    acc = jnp.dot(w_ref[0], xcol,
                  preferred_element_type=jnp.float32)   # (c_out, span) f32
    o_ref[0, 0] = (acc + b_ref[0]).astype(o_ref.dtype)

  # Static dilation per branch -> all slices static; exactly one body runs.
  for idx, d in enumerate((1, 2, 3)):
    @pl.when(br == idx)
    def _(d=d):
      run_branch(d)


def inception_forward(x, params):
  """x: (N, C_in, H, W) float32; params: [(w, b)] * 3 with w (C_out, C_in, 3, 3)."""
  n, c_in, h, w = x.shape
  c_out = params[0][0].shape[0]
  hp, wp = h + 2 * MAX_PAD, w + 2 * MAX_PAD
  p_flat = hp * wp
  span = (h - 1) * wp + w  # columns computed per branch (incl. junk cols)

  # Pad once + cast to bf16 (halves HBM/VMEM traffic; MXU is bf16-native),
  # then flatten spatial so in-kernel window extraction is a lane-offset slice.
  x_pad = jnp.pad(x.astype(jnp.bfloat16),
                  ((0, 0), (0, 0), (MAX_PAD, MAX_PAD), (MAX_PAD, MAX_PAD)))
  x_flat = x_pad.reshape(n, c_in, p_flat)

  # (3, c_out, 9*c_in), row order (kh, kw)-major then c_in -> matches the
  # im2col slab built inside the kernel.
  w_all = jnp.stack([p[0].transpose(0, 2, 3, 1).reshape(c_out, 9 * c_in)
                     for p in params]).astype(jnp.bfloat16)
  b_all = jnp.stack([p[1].reshape(c_out, 1) for p in params]).astype(jnp.float32)

  kernel = functools.partial(inception_kernel, wp=wp, span=span)

  cost = pl.CostEstimate(
      flops=2 * n * 3 * c_out * 9 * c_in * span,
      transcendentals=0,
      bytes_accessed=(x_flat.size * 2 + w_all.size * 2 + b_all.size * 4
                      + n * 3 * c_out * span * 4))

  out = pl.pallas_call(
      kernel,
      out_shape=jax.ShapeDtypeStruct((n, 3, c_out, span), jnp.float32),
      grid=(n, 3),
      in_specs=[
          pl.BlockSpec((1, c_in, p_flat), lambda i, b: (i, 0, 0)),
          pl.BlockSpec((1, c_out, 9 * c_in), lambda i, b: (b, 0, 0)),
          pl.BlockSpec((1, c_out, 1), lambda i, b: (b, 0, 0)),
      ],
      out_specs=pl.BlockSpec((1, 1, c_out, span), lambda i, b: (i, b, 0, 0)),
      compiler_params=pltpu.CompilerParams(
          dimension_semantics=("parallel", "parallel")),
      cost_estimate=cost,
  )(x_flat, w_all, b_all)

  # Strip horizontal-padding columns: flat index m = i*wp + j, keep j < w.
  out = jnp.pad(out, ((0, 0), (0, 0), (0, 0), (0, h * wp - span)))
  out = out.reshape(n, 3, c_out, h, wp)[..., :w]
  return out.reshape(n, 3 * c_out, h, w)


def make_params(key, ch_in, ch_out):
  ks = jax.random.split(key, 6)
  fan_in = ch_in * 3 * 3
  bound = 1.0 / (fan_in ** 0.5)
  params = []
  for i in range(3):
    wgt = jax.random.uniform(ks[2 * i], (ch_out, ch_in, 3, 3), jnp.float32,
                             -bound, bound)
    b = jax.random.uniform(ks[2 * i + 1], (ch_out,), jnp.float32, -bound, bound)
    params.append((wgt, b))
  return params


def reference_forward(x, params):
  outs = []
  for d, (wgt, b) in zip((1, 2, 3), params):
    y = lax.conv_general_dilated(
        x, wgt, window_strides=(1, 1), padding=((d, d), (d, d)),
        rhs_dilation=(d, d), dimension_numbers=("NCHW", "OIHW", "NCHW"),
        precision=lax.Precision.HIGHEST)
    outs.append(y + b[None, :, None, None])
  return jnp.concatenate(outs, axis=1)


if __name__ == "__main__":
  key = jax.random.PRNGKey(0)
  k_x, k_p = jax.random.split(key)

  N, CH_IN, CH_OUT, H, W = 2, 1, 8, 16, 16
  x = jax.random.normal(k_x, (N, CH_IN, H, W), dtype=jnp.float32)
  params = make_params(k_p, CH_IN, CH_OUT)

  out = jax.jit(inception_forward)(x, params)
  out = jax.block_until_ready(out)

  ref = reference_forward(x, params)
  assert out.shape == (N, 3 * CH_OUT, H, W), out.shape
  err = float(jnp.max(jnp.abs(out - ref)))
  # bf16 operands with f32 accumulation: expect ~1e-2-level absolute error.
  assert err < 3e-2, f"mismatch vs JAX reference (max abs err {err})"

  print("KERNEL_OK")
</pallas_src>

<mosaic_0001>
module attributes {stable_mosaic.version = 11 : i64} {
  func.func @inception_kernel(%arg0: i32, %arg1: i32, %arg2: memref<1x1x484xbf16, #tpu.memory_space<vmem>>, %arg3: memref<1x8x9xbf16, #tpu.memory_space<vmem>>, %arg4: memref<1x8x1xf32, #tpu.memory_space<vmem>>, %arg5: memref<1x1x8x346xf32, #tpu.memory_space<vmem>>) attributes {dimension_semantics = [#tpu.dimension_semantics<parallel>, #tpu.dimension_semantics<parallel>], iteration_bounds = array<i64: 2, 3>, scalar_prefetch = 0 : i64, scratch_operands = 0 : i64, tpu.core_type = #tpu.core_type<tc>, window_params = [{transform_indices = @transform_0, window_bounds = array<i64: 1, 1, 484>}, {transform_indices = @transform_1, window_bounds = array<i64: 1, 8, 9>}, {transform_indices = @transform_2, window_bounds = array<i64: 1, 8, 1>}, {transform_indices = @transform_3, window_bounds = array<i64: 1, 1, 8, 346>}]} {
    %c0_i32 = arith.constant 0 : i32
    %0 = arith.cmpi eq, %arg1, %c0_i32 : i32
    %1 = arith.extui %0 : i1 to i32
    %c0_i32_0 = arith.constant 0 : i32
    %2 = arith.cmpi ne, %1, %c0_i32_0 : i32
    scf.if %2 {
      %c0 = arith.constant 0 : index
      %c0_3 = arith.constant 0 : index
      %c46 = arith.constant 46 : index
      %9 = vector.load %arg2[%c0, %c0_3, %c46] : memref<1x1x484xbf16, #tpu.memory_space<vmem>>, vector<1x1x346xbf16>
      %10 = vector.shape_cast %9 : vector<1x1x346xbf16> to vector<1x346xbf16>
      %c0_4 = arith.constant 0 : index
      %c0_5 = arith.constant 0 : index
      %c47 = arith.constant 47 : index
      %11 = vector.load %arg2[%c0_4, %c0_5, %c47] : memref<1x1x484xbf16, #tpu.memory_space<vmem>>, vector<1x1x346xbf16>
      %12 = vector.shape_cast %11 : vector<1x1x346xbf16> to vector<1x346xbf16>
      %c0_6 = arith.constant 0 : index
      %c0_7 = arith.constant 0 : index
      %c48 = arith.constant 48 : index
      %13 = vector.load %arg2[%c0_6, %c0_7, %c48] : memref<1x1x484xbf16, #tpu.memory_space<vmem>>, vector<1x1x346xbf16>
      %14 = vector.shape_cast %13 : vector<1x1x346xbf16> to vector<1x346xbf16>
      %c0_8 = arith.constant 0 : index
      %c0_9 = arith.constant 0 : index
      %c68 = arith.constant 68 : index
      %15 = vector.load %arg2[%c0_8, %c0_9, %c68] : memref<1x1x484xbf16, #tpu.memory_space<vmem>>, vector<1x1x346xbf16>
      %16 = vector.shape_cast %15 : vector<1x1x346xbf16> to vector<1x346xbf16>
      %c0_10 = arith.constant 0 : index
      %c0_11 = arith.constant 0 : index
      %c69 = arith.constant 69 : index
      %17 = vector.load %arg2[%c0_10, %c0_11, %c69] : memref<1x1x484xbf16, #tpu.memory_space<vmem>>, vector<1x1x346xbf16>
      %18 = vector.shape_cast %17 : vector<1x1x346xbf16> to vector<1x346xbf16>
      %c0_12 = arith.constant 0 : index
      %c0_13 = arith.constant 0 : index
      %c70 = arith.constant 70 : index
      %19 = vector.load %arg2[%c0_12, %c0_13, %c70] : memref<1x1x484xbf16, #tpu.memory_space<vmem>>, vector<1x1x346xbf16>
      %20 = vector.shape_cast %19 : vector<1x1x346xbf16> to vector<1x346xbf16>
      %c0_14 = arith.constant 0 : index
      %c0_15 = arith.constant 0 : index
      %c90 = arith.constant 90 : index
      %21 = vector.load %arg2[%c0_14, %c0_15, %c90] : memref<1x1x484xbf16, #tpu.memory_space<vmem>>, vector<1x1x346xbf16>
      %22 = vector.shape_cast %21 : vector<1x1x346xbf16> to vector<1x346xbf16>
      %c0_16 = arith.constant 0 : index
      %c0_17 = arith.constant 0 : index
      %c91 = arith.constant 91 : index
      %23 = vector.load %arg2[%c0_16, %c0_17, %c91] : memref<1x1x484xbf16, #tpu.memory_space<vmem>>, vector<1x1x346xbf16>
      %24 = vector.shape_cast %23 : vector<1x1x346xbf16> to vector<1x346xbf16>
      %c0_18 = arith.constant 0 : index
      %c0_19 = arith.constant 0 : index
      %c92 = arith.constant 92 : index
      %25 = vector.load %arg2[%c0_18, %c0_19, %c92] : memref<1x1x484xbf16, #tpu.memory_space<vmem>>, vector<1x1x346xbf16>
      %26 = vector.shape_cast %25 : vector<1x1x346xbf16> to vector<1x346xbf16>
      %27 = tpu.concatenate %10, %12, %14, %16, %18, %20, %22, %24, %26 in 0 : vector<1x346xbf16>, vector<1x346xbf16>, vector<1x346xbf16>, vector<1x346xbf16>, vector<1x346xbf16>, vector<1x346xbf16>, vector<1x346xbf16>, vector<1x346xbf16>, vector<1x346xbf16> -> vector<9x346xbf16>
      %c0_20 = arith.constant 0 : index
      %c0_21 = arith.constant 0 : index
      %c0_22 = arith.constant 0 : index
      %28 = vector.load %arg3[%c0_20, %c0_21, %c0_22] : memref<1x8x9xbf16, #tpu.memory_space<vmem>>, vector<1x8x9xbf16>
      %29 = vector.shape_cast %28 : vector<1x8x9xbf16> to vector<8x9xbf16>
      %cst = arith.constant dense<0.000000e+00> : vector<8x346xf32>
      %30 = tpu.matmul %29, %27, %cst {dimension_numbers = #tpu.dot_dimension_numbers<[1], [0], [0], [1], [0, 0, 1, 1], [], []>} : vector<8x9xbf16>, vector<9x346xbf16>, vector<8x346xf32> -> vector<8x346xf32>
      %c0_23 = arith.constant 0 : index
      %c0_24 = arith.constant 0 : index
      %c0_25 = arith.constant 0 : index
      %31 = vector.load %arg4[%c0_23, %c0_24, %c0_25] : memref<1x8x1xf32, #tpu.memory_space<vmem>>, vector<1x8x1xf32>
      %32 = vector.shape_cast %31 : vector<1x8x1xf32> to vector<8x1xf32>
      %33 = vector.broadcast %32 : vector<8x1xf32> to vector<8x346xf32>
      %34 = arith.addf %30, %33 : vector<8x346xf32>
      %c0_26 = arith.constant 0 : index
      %c0_27 = arith.constant 0 : index
      %c0_28 = arith.constant 0 : index
      %c0_29 = arith.constant 0 : index
      %35 = vector.load %arg5[%c0_26, %c0_27, %c0_28, %c0_29] : memref<1x1x8x346xf32, #tpu.memory_space<vmem>>, vector<1x1x8x346xf32>
      %36 = vector.shape_cast %35 : vector<1x1x8x346xf32> to vector<8x346xf32>
      %37 = vector.shape_cast %34 : vector<8x346xf32> to vector<1x1x8x346xf32>
      tpu.vector_store %arg5[%c0_26, %c0_27, %c0_28, %c0_29], %37 {strides = array<i32>} : memref<1x1x8x346xf32, #tpu.memory_space<vmem>>, vector<1x1x8x346xf32>,
    } else {
    }
    %c1_i32 = arith.constant 1 : i32
    %3 = arith.cmpi eq, %arg1, %c1_i32 : i32
    %4 = arith.extui %3 : i1 to i32
    %c0_i32_1 = arith.constant 0 : i32
    %5 = arith.cmpi ne, %4, %c0_i32_1 : i32
    scf.if %5 {
      %c0 = arith.constant 0 : index
      %c0_3 = arith.constant 0 : index
      %c23 = arith.constant 23 : index
      %9 = vector.load %arg2[%c0, %c0_3, %c23] : memref<1x1x484xbf16, #tpu.memory_space<vmem>>, vector<1x1x346xbf16>
      %10 = vector.shape_cast %9 : vector<1x1x346xbf16> to vector<1x346xbf16>
      %c0_4 = arith.constant 0 : index
      %c0_5 = arith.constant 0 : index
      %c25 = arith.constant 25 : index
      %11 = vector.load %arg2[%c0_4, %c0_5, %c25] : memref<1x1x484xbf16, #tpu.memory_space<vmem>>, vector<1x1x346xbf16>
      %12 = vector.shape_cast %11 : vector<1x1x346xbf16> to vector<1x346xbf16>
      %c0_6 = arith.constant 0 : index
      %c0_7 = arith.constant 0 : index
      %c27 = arith.constant 27 : index
      %13 = vector.load %arg2[%c0_6, %c0_7, %c27] : memref<1x1x484xbf16, #tpu.memory_space<vmem>>, vector<1x1x346xbf16>
      %14 = vector.shape_cast %13 : vector<1x1x346xbf16> to vector<1x346xbf16>
      %c0_8 = arith.constant 0 : index
      %c0_9 = arith.constant 0 : index
      %c67 = arith.constant 67 : index
      %15 = vector.load %arg2[%c0_8, %c0_9, %c67] : memref<1x1x484xbf16, #tpu.memory_space<vmem>>, vector<1x1x346xbf16>
      %16 = vector.shape_cast %15 : vector<1x1x346xbf16> to vector<1x346xbf16>
      %c0_10 = arith.constant 0 : index
      %c0_11 = arith.constant 0 : index
      %c69 = arith.constant 69 : index
      %17 = vector.load %arg2[%c0_10, %c0_11, %c69] : memref<1x1x484xbf16, #tpu.memory_space<vmem>>, vector<1x1x346xbf16>
      %18 = vector.shape_cast %17 : vector<1x1x346xbf16> to vector<1x346xbf16>
      %c0_12 = arith.constant 0 : index
      %c0_13 = arith.constant 0 : index
      %c71 = arith.constant 71 : index
      %19 = vector.load %arg2[%c0_12, %c0_13, %c71] : memref<1x1x484xbf16, #tpu.memory_space<vmem>>, vector<1x1x346xbf16>
      %20 = vector.shape_cast %19 : vector<1x1x346xbf16> to vector<1x346xbf16>
      %c0_14 = arith.constant 0 : index
      %c0_15 = arith.constant 0 : index
      %c111 = arith.constant 111 : index
      %21 = vector.load %arg2[%c0_14, %c0_15, %c111] : memref<1x1x484xbf16, #tpu.memory_space<vmem>>, vector<1x1x346xbf16>
      %22 = vector.shape_cast %21 : vector<1x1x346xbf16> to vector<1x346xbf16>
      %c0_16 = arith.constant 0 : index
      %c0_17 = arith.constant 0 : index
      %c113 = arith.constant 113 : index
      %23 = vector.load %arg2[%c0_16, %c0_17, %c113] : memref<1x1x484xbf16, #tpu.memory_space<vmem>>, vector<1x1x346xbf16>
      %24 = vector.shape_cast %23 : vector<1x1x346xbf16> to vector<1x346xbf16>
      %c0_18 = arith.constant 0 : index
      %c0_19 = arith.constant 0 : index
      %c115 = arith.constant 115 : index
      %25 = vector.load %arg2[%c0_18, %c0_19, %c115] : memref<1x1x484xbf16, #tpu.memory_space<vmem>>, vector<1x1x346xbf16>
      %26 = vector.shape_cast %25 : vector<1x1x346xbf16> to vector<1x346xbf16>
      %27 = tpu.concatenate %10, %12, %14, %16, %18, %20, %22, %24, %26 in 0 : vector<1x346xbf16>, vector<1x346xbf16>, vector<1x346xbf16>, vector<1x346xbf16>, vector<1x346xbf16>, vector<1x346xbf16>, vector<1x346xbf16>, vector<1x346xbf16>, vector<1x346xbf16> -> vector<9x346xbf16>
      %c0_20 = arith.constant 0 : index
      %c0_21 = arith.constant 0 : index
      %c0_22 = arith.constant 0 : index
      %28 = vector.load %arg3[%c0_20, %c0_21, %c0_22] : memref<1x8x9xbf16, #tpu.memory_space<vmem>>, vector<1x8x9xbf16>
      %29 = vector.shape_cast %28 : vector<1x8x9xbf16> to vector<8x9xbf16>
      %cst = arith.constant dense<0.000000e+00> : vector<8x346xf32>
      %30 = tpu.matmul %29, %27, %cst {dimension_numbers = #tpu.dot_dimension_numbers<[1], [0], [0], [1], [0, 0, 1, 1], [], []>} : vector<8x9xbf16>, vector<9x346xbf16>, vector<8x346xf32> -> vector<8x346xf32>
      %c0_23 = arith.constant 0 : index
      %c0_24 = arith.constant 0 : index
      %c0_25 = arith.constant 0 : index
      %31 = vector.load %arg4[%c0_23, %c0_24, %c0_25] : memref<1x8x1xf32, #tpu.memory_space<vmem>>, vector<1x8x1xf32>
      %32 = vector.shape_cast %31 : vector<1x8x1xf32> to vector<8x1xf32>
      %33 = vector.broadcast %32 : vector<8x1xf32> to vector<8x346xf32>
      %34 = arith.addf %30, %33 : vector<8x346xf32>
      %c0_26 = arith.constant 0 : index
      %c0_27 = arith.constant 0 : index
      %c0_28 = arith.constant 0 : index
      %c0_29 = arith.constant 0 : index
      %35 = vector.load %arg5[%c0_26, %c0_27, %c0_28, %c0_29] : memref<1x1x8x346xf32, #tpu.memory_space<vmem>>, vector<1x1x8x346xf32>
      %36 = vector.shape_cast %35 : vector<1x1x8x346xf32> to vector<8x346xf32>
      %37 = vector.shape_cast %34 : vector<8x346xf32> to vector<1x1x8x346xf32>
      tpu.vector_store %arg5[%c0_26, %c0_27, %c0_28, %c0_29], %37 {strides = array<i32>} : memref<1x1x8x346xf32, #tpu.memory_space<vmem>>, vector<1x1x8x346xf32>,
    } else {
    }
    %c2_i32 = arith.constant 2 : i32
    %6 = arith.cmpi eq, %arg1, %c2_i32 : i32
    %7 = arith.extui %6 : i1 to i32
    %c0_i32_2 = arith.constant 0 : i32
    %8 = arith.cmpi ne, %7, %c0_i32_2 : i32
    scf.if %8 {
      %c0 = arith.constant 0 : index
      %c0_3 = arith.constant 0 : index
      %c0_4 = arith.constant 0 : index
      %9 = vector.load %arg2[%c0, %c0_3, %c0_4] : memref<1x1x484xbf16, #tpu.memory_space<vmem>>, vector<1x1x346xbf16>
      %10 = vector.shape_cast %9 : vector<1x1x346xbf16> to vector<1x346xbf16>
      %c0_5 = arith.constant 0 : index
      %c0_6 = arith.constant 0 : index
      %c3 = arith.constant 3 : index
      %11 = vector.load %arg2[%c0_5, %c0_6, %c3] : memref<1x1x484xbf16, #tpu.memory_space<vmem>>, vector<1x1x346xbf16>
      %12 = vector.shape_cast %11 : vector<1x1x346xbf16> to vector<1x346xbf16>
      %c0_7 = arith.constant 0 : index
      %c0_8 = arith.constant 0 : index
      %c6 = arith.constant 6 : index
      %13 = vector.load %arg2[%c0_7, %c0_8, %c6] : memref<1x1x484xbf16, #tpu.memory_space<vmem>>, vector<1x1x346xbf16>
      %14 = vector.shape_cast %13 : vector<1x1x346xbf16> to vector<1x346xbf16>
      %c0_9 = arith.constant 0 : index
      %c0_10 = arith.constant 0 : index
      %c66 = arith.constant 66 : index
      %15 = vector.load %arg2[%c0_9, %c0_10, %c66] : memref<1x1x484xbf16, #tpu.memory_space<vmem>>, vector<1x1x346xbf16>
      %16 = vector.shape_cast %15 : vector<1x1x346xbf16> to vector<1x346xbf16>
      %c0_11 = arith.constant 0 : index
      %c0_12 = arith.constant 0 : index
      %c69 = arith.constant 69 : index
      %17 = vector.load %arg2[%c0_11, %c0_12, %c69] : memref<1x1x484xbf16, #tpu.memory_space<vmem>>, vector<1x1x346xbf16>
      %18 = vector.shape_cast %17 : vector<1x1x346xbf16> to vector<1x346xbf16>
      %c0_13 = arith.constant 0 : index
      %c0_14 = arith.constant 0 : index
      %c72 = arith.constant 72 : index
      %19 = vector.load %arg2[%c0_13, %c0_14, %c72] : memref<1x1x484xbf16, #tpu.memory_space<vmem>>, vector<1x1x346xbf16>
      %20 = vector.shape_cast %19 : vector<1x1x346xbf16> to vector<1x346xbf16>
      %c0_15 = arith.constant 0 : index
      %c0_16 = arith.constant 0 : index
      %c132 = arith.constant 132 : index
      %21 = vector.load %arg2[%c0_15, %c0_16, %c132] : memref<1x1x484xbf16, #tpu.memory_space<vmem>>, vector<1x1x346xbf16>
      %22 = vector.shape_cast %21 : vector<1x1x346xbf16> to vector<1x346xbf16>
      %c0_17 = arith.constant 0 : index
      %c0_18 = arith.constant 0 : index
      %c135 = arith.constant 135 : index
      %23 = vector.load %arg2[%c0_17, %c0_18, %c135] : memref<1x1x484xbf16, #tpu.memory_space<vmem>>, vector<1x1x346xbf16>
      %24 = vector.shape_cast %23 : vector<1x1x346xbf16> to vector<1x346xbf16>
      %c0_19 = arith.constant 0 : index
      %c0_20 = arith.constant 0 : index
      %c138 = arith.constant 138 : index
      %25 = vector.load %arg2[%c0_19, %c0_20, %c138] : memref<1x1x484xbf16, #tpu.memory_space<vmem>>, vector<1x1x346xbf16>
      %26 = vector.shape_cast %25 : vector<1x1x346xbf16> to vector<1x346xbf16>
      %27 = tpu.concatenate %10, %12, %14, %16, %18, %20, %22, %24, %26 in 0 : vector<1x346xbf16>, vector<1x346xbf16>, vector<1x346xbf16>, vector<1x346xbf16>, vector<1x346xbf16>, vector<1x346xbf16>, vector<1x346xbf16>, vector<1x346xbf16>, vector<1x346xbf16> -> vector<9x346xbf16>
      %c0_21 = arith.constant 0 : index
      %c0_22 = arith.constant 0 : index
      %c0_23 = arith.constant 0 : index
      %28 = vector.load %arg3[%c0_21, %c0_22, %c0_23] : memref<1x8x9xbf16, #tpu.memory_space<vmem>>, vector<1x8x9xbf16>
      %29 = vector.shape_cast %28 : vector<1x8x9xbf16> to vector<8x9xbf16>
      %cst = arith.constant dense<0.000000e+00> : vector<8x346xf32>
      %30 = tpu.matmul %29, %27, %cst {dimension_numbers = #tpu.dot_dimension_numbers<[1], [0], [0], [1], [0, 0, 1, 1], [], []>} : vector<8x9xbf16>, vector<9x346xbf16>, vector<8x346xf32> -> vector<8x346xf32>
      %c0_24 = arith.constant 0 : index
      %c0_25 = arith.constant 0 : index
      %c0_26 = arith.constant 0 : index
      %31 = vector.load %arg4[%c0_24, %c0_25, %c0_26] : memref<1x8x1xf32, #tpu.memory_space<vmem>>, vector<1x8x1xf32>
      %32 = vector.shape_cast %31 : vector<1x8x1xf32> to vector<8x1xf32>
      %33 = vector.broadcast %32 : vector<8x1xf32> to vector<8x346xf32>
      %34 = arith.addf %30, %33 : vector<8x346xf32>
      %c0_27 = arith.constant 0 : index
      %c0_28 = arith.constant 0 : index
      %c0_29 = arith.constant 0 : index
      %c0_30 = arith.constant 0 : index
      %35 = vector.load %arg5[%c0_27, %c0_28, %c0_29, %c0_30] : memref<1x1x8x346xf32, #tpu.memory_space<vmem>>, vector<1x1x8x346xf32>
      %36 = vector.shape_cast %35 : vector<1x1x8x346xf32> to vector<8x346xf32>
      %37 = vector.shape_cast %34 : vector<8x346xf32> to vector<1x1x8x346xf32>
      tpu.vector_store %arg5[%c0_27, %c0_28, %c0_29, %c0_30], %37 {strides = array<i32>} : memref<1x1x8x346xf32, #tpu.memory_space<vmem>>, vector<1x1x8x346xf32>,
    } else {
    }
    return
  }
  func.func @transform_0(%arg0: i32, %arg1: i32) -> (i32, i32, i32) {
    %c0_i32 = arith.constant 0 : i32
    %c0_i32_0 = arith.constant 0 : i32
    %c0_i32_1 = arith.constant 0 : i32
    return %arg0, %c0_i32, %c0_i32_0 : i32, i32, i32
  }
  func.func @transform_1(%arg0: i32, %arg1: i32) -> (i32, i32, i32) {
    %c0_i32 = arith.constant 0 : i32
    %c0_i32_0 = arith.constant 0 : i32
    %c0_i32_1 = arith.constant 0 : i32
    return %arg1, %c0_i32, %c0_i32_0 : i32, i32, i32
  }
  func.func @transform_2(%arg0: i32, %arg1: i32) -> (i32, i32, i32) {
    %c0_i32 = arith.constant 0 : i32
    %c0_i32_0 = arith.constant 0 : i32
    %c0_i32_1 = arith.constant 0 : i32
    return %arg1, %c0_i32, %c0_i32_0 : i32, i32, i32
  }
  func.func @transform_3(%arg0: i32, %arg1: i32) -> (i32, i32, i32, i32) {
    %c0_i32 = arith.constant 0 : i32
    %c0_i32_0 = arith.constant 0 : i32
    %c0_i32_1 = arith.constant 0 : i32
    return %arg0, %arg1, %c0_i32, %c0_i32_0 : i32, i32, i32, i32
  }
}

</mosaic_0001>

<llo_original>
// kernel: inception_forward.1
$region0: #{inception_forward.1}
  #allocation0 [shape = 'u32[]', space=smem, size = 0x4, offset = 0x4, fixed_abs, tag = 'smem constant byte address 0x4 - core index']
  #allocation1 [shape = 'u32[72,128]{1,0:T(1,128)}', space=vmem, size = 0x9000, scoped, tag = 'internal scratch']
  %s0 = inlined_call_operand.vmem [shape: bf16[2,1,484], index: 0, kind: input, shape index: {}]
  %s1 = inlined_call_operand.vmem [shape: bf16[3,8,9], index: 1, kind: input, shape index: {}]
  %s2 = inlined_call_operand.vmem [shape: f32[3,8,1], index: 2, kind: input, shape index: {}]
  %s3 = inlined_call_operand.vmem [shape: f32[2,3,8,346], index: 3, kind: output, shape index: {}]
  %s4 = sld [smem:[#allocation0]]
  $region57: #{inception_forward.1} parent=0
    _
  %s6 = ssub.s32 1, %s4
  %s7 = scalar_select 0, %s6, %s4
  loop: start=0, step=1, limit=8
  $region2: #{inception_forward.1} parent=0 // loop_pre_header
    _
  $region3: #{inception_forward.1} parent=0 // loop_header
    %s9 = sphi 0, %s13
    %p10 = scmp.ge.s32.totalorder %s9, 8
    %s16 = sphi 0, %s28
    %s17 = sphi 0, %s24
    %s18 = sphi 0, %s16
    %s19 = sphi 0, %s17
    %s20 = sphi 0, %s18
    %s21 = sphi 0, %s19
    %s31 = sphi 0, %s33
    %s34 = sphi 0, %s31
    %s35 = sphi 0, %s34
    %s51 = sphi 0, %s35
    %s57 = sphi 0, %s59
    %s60 = sphi 0, %s57
    %s61 = sphi 0, %s60
    %s77 = sphi 0, %s61
    %s83 = sphi 0, %s85
    %s86 = sphi 0, %s83
    %s87 = sphi 0, %s86
    %s103 = sphi 0, %s87
    %s111 = sphi 0, %s113
    %s114 = sphi 0, %s111
    %s115 = sphi 0, %s114
    %s131 = sphi 0, %s115
  $region4: #{inception_forward.1} parent=0 // loop_header_branch
    %12 = sbr.rel (%p10) target = $region8
  $region5: #{inception_forward.1} parent=0 // loop_body
    %s14 = ssub.s32 %s9, 1
    %s15 = ssub.s32 %s9, 2
    %s22 = sadd.s32 1, %s17
    %p23 = scmp.ge.s32.totalorder %s22, 3
    %s24 = scalar_select %p23, 0, %s22
    %s25 = sadd.s32 1, %s16
    %s26 = scalar_select %p23, %s25, %s16
    %p27 = scmp.ge.s32.totalorder %s26, 2
    %s28 = scalar_select %p27, 0, %s26
    %s29 = ssub.s32 %s16, %s28
    %p30 = scmp.eq.s32.totalorder %s29, 0
    %s32 = sadd.s32 %s31, 1
    %s33 = scalar_select %p30, %s31, %s32
    %p36 = pneg %p30
    %p37 = scmp.eq.s32.totalorder %s9, 5
    %p38 = por %p36, %p37
    %p39 = scmp.ne.s32.totalorder %s31, %s34
    %p40 = scmp.eq.s32.totalorder %s9, 0
    %p41 = por %p39, %p40
    %p42 = scmp.ne.s32.totalorder %s31, %s34
    %p43 = scmp.eq.s32.totalorder %s14, 5
    %p44 = por %p42, %p43
    %p45 = scmp.ne.s32.totalorder %s34, %s35
    %p46 = scmp.eq.s32.totalorder %s14, 0
    %p47 = por %p45, %p46
    %p48 = scmp.ne.s32.totalorder %s34, %s35
    %p49 = scmp.eq.s32.totalorder %s15, 5
    %p50 = por %p48, %p49
    %p52 = scmp.ne.s32.totalorder %s35, %s51
    %p53 = scmp.eq.s32.totalorder %s15, 0
    %p54 = por %p52, %p53
    %s55 = ssub.s32 %s17, %s24
    %p56 = scmp.eq.s32.totalorder %s55, 0
    %s58 = sadd.s32 %s57, 1
    %s59 = scalar_select %p56, %s57, %s58
    %p62 = pneg %p56
    %p63 = scmp.eq.s32.totalorder %s9, 5
    %p64 = por %p62, %p63
    %p65 = scmp.ne.s32.totalorder %s57, %s60
    %p66 = scmp.eq.s32.totalorder %s9, 0
    %p67 = por %p65, %p66
    %p68 = scmp.ne.s32.totalorder %s57, %s60
    %p69 = scmp.eq.s32.totalorder %s14, 5
    %p70 = por %p68, %p69
    %p71 = scmp.ne.s32.totalorder %s60, %s61
    %p72 = scmp.eq.s32.totalorder %s14, 0
    %p73 = por %p71, %p72
    %p74 = scmp.ne.s32.totalorder %s60, %s61
    %p75 = scmp.eq.s32.totalorder %s15, 5
    %p76 = por %p74, %p75
    %p78 = scmp.ne.s32.totalorder %s61, %s77
    %p79 = scmp.eq.s32.totalorder %s15, 0
    %p80 = por %p78, %p79
    %s81 = ssub.s32 %s17, %s24
    %p82 = scmp.eq.s32.totalorder %s81, 0
    %s84 = sadd.s32 %s83, 1
    %s85 = scalar_select %p82, %s83, %s84
    %p88 = pneg %p82
    %p89 = scmp.eq.s32.totalorder %s9, 5
    %p90 = por %p88, %p89
    %p91 = scmp.ne.s32.totalorder %s83, %s86
    %p92 = scmp.eq.s32.totalorder %s9, 0
    %p93 = por %p91, %p92
    %p94 = scmp.ne.s32.totalorder %s83, %s86
    %p95 = scmp.eq.s32.totalorder %s14, 5
    %p96 = por %p94, %p95
    %p97 = scmp.ne.s32.totalorder %s86, %s87
    %p98 = scmp.eq.s32.totalorder %s14, 0
    %p99 = por %p97, %p98
    %p100 = scmp.ne.s32.totalorder %s86, %s87
    %p101 = scmp.eq.s32.totalorder %s15, 5
    %p102 = por %p100, %p101
    %p104 = scmp.ne.s32.totalorder %s87, %s103
    %p105 = scmp.eq.s32.totalorder %s15, 0
    %p106 = por %p104, %p105
    %s107 = ssub.s32 %s16, %s28
    %s108 = ssub.s32 %s17, %s24
    %s109 = sor.u32 %s107, %s108
    %p110 = scmp.eq.s32.totalorder %s109, 0
    %s112 = sadd.s32 %s111, 1
    %s113 = scalar_select %p110, %s111, %s112
    %p116 = pneg %p110
    %p117 = scmp.eq.s32.totalorder %s9, 5
    %p118 = por %p116, %p117
    %p119 = scmp.ne.s32.totalorder %s111, %s114
    %p120 = scmp.eq.s32.totalorder %s9, 0
    %p121 = por %p119, %p120
    %p122 = scmp.ne.s32.totalorder %s111, %s114
    %p123 = scmp.eq.s32.totalorder %s14, 5
    %p124 = por %p122, %p123
    %p125 = scmp.ne.s32.totalorder %s114, %s115
    %p126 = scmp.eq.s32.totalorder %s14, 0
    %p127 = por %p125, %p126
    %p128 = scmp.ne.s32.totalorder %s114, %s115
    %p129 = scmp.eq.s32.totalorder %s15, 5
    %p130 = por %p128, %p129
    %p132 = scmp.ne.s32.totalorder %s115, %s131
    %p133 = scmp.eq.s32.totalorder %s15, 0
    %p134 = por %p132, %p133
    %p135 = scmp.le.s32.totalorder 1, %s9
    %p136 = scmp.lt.s32.totalorder %s9, 7
    %p137 = pnand %p135, %p136
    %p138 = pneg %p137
    // Predicated region
    $region9: #{inception_forward.1} parent=5 // pred_check
      _
    $region10: #{inception_forward.1} parent=5 // pred_check_branch
      %140 = sbr.rel (%p137) target = $region12
    $region11: #{inception_forward.1} parent=5 // pred_region
      %s141 = ssub.s32 %s9, 1
    $region12: #{inception_forward.1} parent=5 // pred_fallthru
      _
    %p142 = scmp.lt.s32.totalorder %s9, 6
    // Predicated region
    $region13: #{inception_forward.1} parent=5 // pred_check
      %p143 = pneg %p142
    $region14: #{inception_forward.1} parent=5 // pred_check_branch
      %145 = sbr.rel (%p143) target = $region16
    $region15: #{inception_forward.1} parent=5 // pred_region
      // Predicated region
      $region17: #{inception_forward.1} parent=15 // pred_check
        %p146 = pneg %p41
      $region18: #{inception_forward.1} parent=15 // pred_check_branch
        %148 = sbr.rel (%p146) target = $region20
      $region19: #{inception_forward.1} parent=15 // pred_region
        %p149 = scmp.lt.s32.totalorder %s16, 1
        %s150 = scalar_select %p149, %s16, 1
        %s151 = smul.addr %s150, 4
        %s152 = scalar_lea.vmem %s0, %s151
      $region20: #{inception_forward.1} parent=15 // pred_fallthru
        _
      // Predicated region
      $region21: #{inception_forward.1} parent=15 // pred_check
        %p153 = pneg %p67
      $region22: #{inception_forward.1} parent=15 // pred_check_branch
        %155 = sbr.rel (%p153) target = $region24
      $region23: #{inception_forward.1} parent=15 // pred_region
        %p156 = scmp.lt.s32.totalorder %s17, 2
        %s157 = scalar_select %p156, %s17, 2
        %s158 = smul.addr %s157, 4
        %s159 = scalar_lea.vmem %s1, %s158
      $region24: #{inception_forward.1} parent=15 // pred_fallthru
        _
      // Predicated region
      $region25: #{inception_forward.1} parent=15 // pred_check
        %p160 = pneg %p93
      $region26: #{inception_forward.1} parent=15 // pred_check_branch
        %162 = sbr.rel (%p160) target = $region28
      $region27: #{inception_forward.1} parent=15 // pred_region
        %p163 = scmp.lt.s32.totalorder %s17, 2
        %s164 = scalar_select %p163, %s17, 2
        %s165 = smul.addr %s164, 8
        %s166 = scalar_lea.vmem %s2, %s165
      $region28: #{inception_forward.1} parent=15 // pred_fallthru
        _
    $region16: #{inception_forward.1} parent=5 // pred_fallthru
      _
    %p167 = scmp.le.s32.totalorder 1, %s9
    %p168 = scmp.lt.s32.totalorder %s9, 7
    %p169 = pnand %p167, %p168
    %p170 = pneg %p169
    // Predicated region
    $region29: #{inception_forward.1} parent=5 // pred_check
      _
    $region30: #{inception_forward.1} parent=5 // pred_check_branch
      %172 = sbr.rel (%p169) target = $region32
    $region31: #{inception_forward.1} parent=5 // pred_region
      %s173 = ssub.s32 %s9, 1
      %p174 = scmp.lt.s32.totalorder %s18, 1
      %s175 = scalar_select %p174, %s18, 1
      %s176 = smul.addr %s175, 4
      %s177 = scalar_lea.vmem %s0, %s176
      %p178 = pneg %p47
      %p179 = pneg %p44
      %p180 = scmp.lt.s32.totalorder %s19, 2
      %s181 = scalar_select %p180, %s19, 2
      %s182 = smul.addr %s181, 4
      %s183 = scalar_lea.vmem %s1, %s182
      %p184 = pneg %p73
      %p185 = pneg %p70
      %p186 = scmp.lt.s32.totalorder %s19, 2
      %s187 = scalar_select %p186, %s19, 2
      %s188 = smul.addr %s187, 8
      %s189 = scalar_lea.vmem %s2, %s188
      %p190 = pneg %p99
      %p191 = pneg %p96
      %p192 = pneg %p127
      %p193 = pneg %p124
      %p194 = scmp.lt.s32.totalorder %s18, 1
      %s195 = scalar_select %p194, %s18, 1
      %p196 = scmp.lt.s32.totalorder %s19, 2
      %s197 = scalar_select %p196, %s19, 2
      %s198 = smul.addr %s197, 3
      %s199 = smul.addr %s195, 9
      %s200 = sadd.s32 %s198, %s199
      %s201 = smul.addr %s200, 8
      %s202 = scalar_lea.vmem %s3, %s201
      %p203 = scmp.lt.s32.totalorder %s18, 1
      %s204 = scalar_select %p203, %s18, 1
      %s205 = smul.addr %s204, 4
      %s206 = scalar_lea.vmem %s0, %s205
      %p207 = scmp.lt.s32.totalorder %s19, 2
      %s208 = scalar_select %p207, %s19, 2
      %s209 = smul.addr %s208, 4
      %s210 = scalar_lea.vmem %s1, %s209
      %p211 = scmp.lt.s32.totalorder %s19, 2
      %s212 = scalar_select %p211, %s19, 2
      %s213 = smul.addr %s212, 8
      %s214 = scalar_lea.vmem %s2, %s213
      %p215 = scmp.lt.s32.totalorder %s18, 1
      %s216 = scalar_select %p215, %s18, 1
      %p217 = scmp.lt.s32.totalorder %s19, 2
      %s218 = scalar_select %p217, %s19, 2
      %s219 = smul.addr %s218, 3
      %s220 = smul.addr %s216, 9
      %s221 = sadd.s32 %s219, %s220
      %s222 = smul.addr %s221, 8
      %s223 = scalar_lea.vmem %s3, %s222
      %p225 = scmp.eq.s32.totalorder %s19, 0
      // Predicated region
      $region33: #{inception_forward.1} parent=31 // pred_check
        %p226 = pneg %p225
      $region34: #{inception_forward.1} parent=31 // pred_check_branch
        %228 = sbr.rel (%p226) target = $region36
      $region35: #{inception_forward.1} parent=31 // pred_region
        %v229 = vld [vmem:[%s206] sm:$0xf]
        %231 = vst [vmem:[#allocation1] ss:$9 sm:$0xff] %v229
        %v232 = vld [vmem:[#allocation1] sm:$0xff]
        %v233 = vld [vmem:[#allocation1 + $0x9] sm:$0xff]
        %v234 = vld [vmem:[#allocation1 + $0x12] sm:$0xff]
        %v235 = vld [vmem:[#allocation1 + $0x1b] sm:$0xff]
        %240 = vst [vmem:[#allocation1] ss:$9 sm:$0xff] %v229
        %v241 = vld [vmem:[#allocation1] sm:$0xff]
        %v242 = vld [vmem:[#allocation1 + $0x9] sm:$0xff]
        %v243 = vld [vmem:[#allocation1 + $0x12] sm:$0xff]
        %v244 = vld [vmem:[#allocation1 + $0x1b] sm:$0xff]
        %v245 = vshll.u32 %v241, 16
        %v247 = vshll.u32 %v242, 16
        %v249 = vshll.u32 %v243, 16
        %v251 = vshll.u32 %v244, 16
        %253 = vrot.lane.b32.xlu0 %v245, 127
        %v254 = vpop.permute.xlu0 %253
        %255 = vrot.lane.b32.xlu0 %v247, 127
        %v256 = vpop.permute.xlu0 %255
        %257 = vrot.lane.b32.xlu0 %v249, 127
        %v258 = vpop.permute.xlu0 %257
        %259 = vrot.lane.b32.xlu0 %v251, 127
        %v260 = vpop.permute.xlu0 %259
        %vm261 = vcmask 1039360
        %v262 = vsel %vm261, %v254, %v256
        %v263 = vsel %vm261, %v256, %v258
        %v264 = vsel %vm261, %v258, %v260
        %s269 = scalar_lea.vmem [#allocation1], 1
        %270 = vst [vmem:[%s269] ss:$9 sm:$0xff] %v229
        %v271 = vld [vmem:[#allocation1] sm:$0xff]
        %v273 = vld [vmem:[#allocation1 + $0x9] sm:$0xff]
        %v275 = vld [vmem:[#allocation1 + $0x12] sm:$0xff]
        %v277 = vld [vmem:[#allocation1 + $0x1b] sm:$0xff]
        %279 = vrot.lane.b32.xlu0 %v271, 126
        %v280 = vpop.permute.xlu0 %279
        %281 = vrot.lane.b32.xlu0 %v273, 126
        %v282 = vpop.permute.xlu0 %281
        %283 = vrot.lane.b32.xlu0 %v275, 126
        %v284 = vpop.permute.xlu0 %283
        %285 = vrot.lane.b32.xlu0 %v277, 126
        %v286 = vpop.permute.xlu0 %285
        %vm287 = vcmask 1031168
        %v288 = vsel %vm287, %v280, %v282
        %v289 = vsel %vm287, %v282, %v284
        %v290 = vsel %vm287, %v284, %v286
        %291 = vst [vmem:[#allocation1] ss:$9 sm:$0xff] %v229
        %v292 = vld [vmem:[#allocation1] sm:$0xff]
        %v293 = vld [vmem:[#allocation1 + $0x9] sm:$0xff]
        %v294 = vld [vmem:[#allocation1 + $0x12] sm:$0xff]
        %v295 = vld [vmem:[#allocation1 + $0x1b] sm:$0xff]
        %v296 = vshll.u32 %v292, 16
        %v298 = vrot.slane %v296, 7
        %v299 = vshll.u32 %v293, 16
        %v301 = vrot.slane %v299, 7
        %v302 = vshll.u32 %v294, 16
        %v304 = vrot.slane %v302, 7
        %v305 = vshll.u32 %v295, 16
        %v307 = vrot.slane %v305, 7
        %308 = vrot.lane.b32.xlu0 %v298, 106
        %v309 = vpop.permute.xlu0 %308
        %310 = vrot.lane.b32.xlu0 %v301, 106
        %v311 = vpop.permute.xlu0 %310
        %312 = vrot.lane.b32.xlu0 %v304, 106
        %v313 = vpop.permute.xlu0 %312
        %314 = vrot.lane.b32.xlu0 %v307, 106
        %v315 = vpop.permute.xlu0 %314
        %vm316 = vcmask 867328
        %v317 = vsel %vm316, %v309, %v311
        %v318 = vsel %vm316, %v311, %v313
        %v319 = vsel %vm316, %v313, %v315
        %s324 = scalar_lea.vmem [#allocation1], 2
        %325 = vst [vmem:[%s324] ss:$9 sm:$0xff] %v229
        %v326 = vld [vmem:[#allocation1] sm:$0xff]
        %v328 = vld [vmem:[#allocation1 + $0x9] sm:$0xff]
        %v330 = vld [vmem:[#allocation1 + $0x12] sm:$0xff]
        %v332 = vld [vmem:[#allocation1 + $0x1b] sm:$0xff]
        %334 = vrot.lane.b32.xlu0 %v326, 105
        %v335 = vpop.permute.xlu0 %334
        %336 = vrot.lane.b32.xlu0 %v328, 105
        %v337 = vpop.permute.xlu0 %336
        %338 = vrot.lane.b32.xlu0 %v330, 105
        %v339 = vpop.permute.xlu0 %338
        %340 = vrot.lane.b32.xlu0 %v332, 105
        %v341 = vpop.permute.xlu0 %340
        %vm342 = vcmask 859136
        %v343 = vsel %vm342, %v335, %v337
        %v344 = vsel %vm342, %v337, %v339
        %v345 = vsel %vm342, %v339, %v341
        %346 = vst [vmem:[#allocation1] ss:$9 sm:$0xff] %v229
        %v347 = vld [vmem:[#allocation1] sm:$0xff]
        %v348 = vld [vmem:[#allocation1 + $0x9] sm:$0xff]
        %v349 = vld [vmem:[#allocation1 + $0x12] sm:$0xff]
        %v350 = vld [vmem:[#allocation1 + $0x1b] sm:$0xff]
        %v351 = vshll.u32 %v347, 16
        %v353 = vrot.slane %v351, 6
        %v354 = vshll.u32 %v348, 16
        %v356 = vrot.slane %v354, 6
        %v357 = vshll.u32 %v349, 16
        %v359 = vrot.slane %v357, 6
        %v360 = vshll.u32 %v350, 16
        %v362 = vrot.slane %v360, 6
        %363 = vrot.lane.b32.xlu0 %v353, 104
        %v364 = vpop.permute.xlu0 %363
        %365 = vrot.lane.b32.xlu0 %v356, 104
        %v366 = vpop.permute.xlu0 %365
        %367 = vrot.lane.b32.xlu0 %v359, 104
        %v368 = vpop.permute.xlu0 %367
        %369 = vrot.lane.b32.xlu0 %v362, 104
        %v370 = vpop.permute.xlu0 %369
        %vm371 = vcmask 850944
        %v372 = vsel %vm371, %v364, %v366
        %v373 = vsel %vm371, %v366, %v368
        %v374 = vsel %vm371, %v368, %v370
        %s379 = scalar_lea.vmem [#allocation1], 3
        %380 = vst [vmem:[%s379] ss:$9 sm:$0xff] %v229
        %v381 = vld [vmem:[#allocation1] sm:$0xff]
        %v383 = vld [vmem:[#allocation1 + $0x9] sm:$0xff]
        %v385 = vld [vmem:[#allocation1 + $0x12] sm:$0xff]
        %v387 = vld [vmem:[#allocation1 + $0x1b] sm:$0xff]
        %389 = vrot.lane.b32.xlu0 %v381, 84
        %v390 = vpop.permute.xlu0 %389
        %391 = vrot.lane.b32.xlu0 %v383, 84
        %v392 = vpop.permute.xlu0 %391
        %393 = vrot.lane.b32.xlu0 %v385, 84
        %v394 = vpop.permute.xlu0 %393
        %395 = vrot.lane.b32.xlu0 %v387, 84
        %v396 = vpop.permute.xlu0 %395
        %vm397 = vcmask 687104
        %v398 = vsel %vm397, %v390, %v392
        %v399 = vsel %vm397, %v392, %v394
        %v400 = vsel %vm397, %v394, %v396
        %401 = vst [vmem:[#allocation1] ss:$9 sm:$0xff] %v229
        %v402 = vld [vmem:[#allocation1] sm:$0xff]
        %v403 = vld [vmem:[#allocation1 + $0x9] sm:$0xff]
        %v404 = vld [vmem:[#allocation1 + $0x12] sm:$0xff]
        %v405 = vld [vmem:[#allocation1 + $0x1b] sm:$0xff]
        %v406 = vshll.u32 %v402, 16
        %v408 = vrot.slane %v406, 5
        %v409 = vshll.u32 %v403, 16
        %v411 = vrot.slane %v409, 5
        %v412 = vshll.u32 %v404, 16
        %v414 = vrot.slane %v412, 5
        %v415 = vshll.u32 %v405, 16
        %v417 = vrot.slane %v415, 5
        %418 = vrot.lane.b32.xlu0 %v408, 83
        %v419 = vpop.permute.xlu0 %418
        %420 = vrot.lane.b32.xlu0 %v411, 83
        %v421 = vpop.permute.xlu0 %420
        %422 = vrot.lane.b32.xlu0 %v414, 83
        %v423 = vpop.permute.xlu0 %422
        %424 = vrot.lane.b32.xlu0 %v417, 83
        %v425 = vpop.permute.xlu0 %424
        %vm426 = vcmask 678912
        %v427 = vsel %vm426, %v419, %v421
        %v428 = vsel %vm426, %v421, %v423
        %v429 = vsel %vm426, %v423, %v425
        %s434 = scalar_lea.vmem [#allocation1], 4
        %435 = vst [vmem:[%s434] ss:$9 sm:$0xff] %v229
        %v436 = vld [vmem:[#allocation1] sm:$0xff]
        %v438 = vld [vmem:[#allocation1 + $0x9] sm:$0xff]
        %v440 = vld [vmem:[#allocation1 + $0x12] sm:$0xff]
        %v442 = vld [vmem:[#allocation1 + $0x1b] sm:$0xff]
        %444 = vrot.lane.b32.xlu0 %v436, 82
        %v445 = vpop.permute.xlu0 %444
        %446 = vrot.lane.b32.xlu0 %v438, 82
        %v447 = vpop.permute.xlu0 %446
        %448 = vrot.lane.b32.xlu0 %v440, 82
        %v449 = vpop.permute.xlu0 %448
        %450 = vrot.lane.b32.xlu0 %v442, 82
        %v451 = vpop.permute.xlu0 %450
        %vm452 = vcmask 670720
        %v453 = vsel %vm452, %v445, %v447
        %v454 = vsel %vm452, %v447, %v449
        %v455 = vsel %vm452, %v449, %v451
        %vm456 = vcmask 1040384
        %vm457 = vsmask.f32 256
        %vm458 = vmand %vm456, %vm457
        %v459 = vsel %vm458, %v232, %v262
        %v460 = vsel %vm458, %v233, %v263
        %v461 = vsel %vm458, %v234, %v264
        %v462 = vsel %vm458, %v235, %v260
        %vm463 = vcmask 1040384
        %v466 = vsel %vm463, %v459, %v288
        %v470 = vsel %vm463, %v460, %v289
        %v474 = vsel %vm463, %v461, %v290
        %v478 = vsel %vm463, %v462, %v286
        %vm480 = vcmask 1041408
        %vm481 = vsmask.f32 1280
        %vm482 = vmand %vm480, %vm481
        %v483 = vsel %vm482, %v466, %v317
        %v484 = vsel %vm482, %v470, %v318
        %v485 = vsel %vm482, %v474, %v319
        %v486 = vsel %vm482, %v478, %v315
        %vm487 = vcmask 1041408
        %v490 = vsel %vm487, %v483, %v343
        %v494 = vsel %vm487, %v484, %v344
        %v498 = vsel %vm487, %v485, %v345
        %v502 = vsel %vm487, %v486, %v341
        %vm504 = vcmask 1042432
        %vm505 = vsmask.f32 2304
        %vm506 = vmand %vm504, %vm505
        %v507 = vsel %vm506, %v490, %v372
        %v508 = vsel %vm506, %v494, %v373
        %v509 = vsel %vm506, %v498, %v374
        %v510 = vsel %vm506, %v502, %v370
        %vm511 = vcmask 1042432
        %v514 = vsel %vm511, %v507, %v398
        %v518 = vsel %vm511, %v508, %v399
        %v522 = vsel %vm511, %v509, %v400
        %v526 = vsel %vm511, %v510, %v396
        %vm528 = vcmask 1043456
        %vm529 = vsmask.f32 3328
        %vm530 = vmand %vm528, %vm529
        %v531 = vsel %vm530, %v514, %v427
        %v532 = vsel %vm530, %v518, %v428
        %v533 = vsel %vm530, %v522, %v429
        %v534 = vsel %vm530, %v526, %v425
        %vm535 = vcmask 1043456
        %v538 = vsel %vm535, %v531, %v453
        %v541 = vsel %vm535, %v532, %v454
        %v544 = vsel %vm535, %v533, %v455
        %v547 = vsel %vm535, %v534, %v451
        %v548 = vld [vmem:[%s210] sm:$0xf]
        %v549 = vld [vmem:[%s214] sm:$0xff]
        %551 = vset.pattern.permute.xlu0 0
        %552 = vperm.xlu0 %551, %v549
        %v553 = vpop.permute.xlu0 %552
        %559 = vrot.lane.b32.xlu0 %v538, 82
        %v560 = vpop.permute.xlu0 %559
        %561 = vrot.lane.b32.xlu0 %v541, 82
        %v562 = vpop.permute.xlu0 %561
        %563 = vrot.lane.b32.xlu0 %v544, 82
        %v564 = vpop.permute.xlu0 %563
        %565 = vrot.lane.b32.xlu0 %v547, 82
        %v566 = vpop.permute.xlu0 %565
        %v567 = vsel %vm452, %v560, %v562
        %v568 = vsel %vm452, %v562, %v564
        %v569 = vsel %vm452, %v564, %v566
        %vm570 = vcmask 72704
        %v572 = vsel %vm570, %v548, 0
        %vm574 = vcmask 1044480
        %v575 = vsel %vm535, 4294967295, 65535
        %v576 = vsel %vm574, %v575, 0
        %v578 = vand.u32 %v567, %v576
        %v581 = vand.u32 %v568, %v576
        %v584 = vand.u32 %v569, %v576
        %586 = vmatpush.bf16.msra.mxu0 0
        %587 = vmatpush.bf16.msra.mxu0 0
        %588 = vmatpush.bf16.msra.mxu0 0
        %589 = vmatpush.bf16.msra.mxu0 0
        %590 = vmatpush.bf16.msra.mxu0 0
        %591 = vmatpush.bf16.msra.mxu0 0
        %592 = vmatpush.bf16.msra.mxu0 0
        %593 = vmatpush.bf16.msra.mxu0 %v578
        %594 = vmatmul.bf16.gmra.mxu0 %v572
        %v595 = vpop.f32.mrf.mxu0
        %v596 = vadd.f32 %v553, %v595
        %v597 = vpop.f32.mrf.mxu0
        %598 = vdwg.mxu0
        %599 = vmatpush.bf16.msra.mxu0 0
        %600 = vmatpush.bf16.msra.mxu0 0
        %601 = vmatpush.bf16.msra.mxu0 0
        %602 = vmatpush.bf16.msra.mxu0 0
        %603 = vmatpush.bf16.msra.mxu0 0
        %604 = vmatpush.bf16.msra.mxu0 0
        %605 = vmatpush.bf16.msra.mxu0 0
        %606 = vmatpush.bf16.msra.mxu0 %v581
        %607 = vmatmul.bf16.gmra.mxu0 %v572
        %v608 = vpop.f32.mrf.mxu0
        %v609 = vadd.f32 %v553, %v608
        %v610 = vpop.f32.mrf.mxu0
        %611 = vdwg.mxu0
        %612 = vmatpush.bf16.msra.mxu0 0
        %613 = vmatpush.bf16.msra.mxu0 0
        %614 = vmatpush.bf16.msra.mxu0 0
        %615 = vmatpush.bf16.msra.mxu0 0
        %616 = vmatpush.bf16.msra.mxu0 0
        %617 = vmatpush.bf16.msra.mxu0 0
        %618 = vmatpush.bf16.msra.mxu0 0
        %619 = vmatpush.bf16.msra.mxu0 %v584
        %620 = vmatmul.bf16.gmra.mxu0 %v572
        %v621 = vpop.f32.mrf.mxu0
        %v622 = vadd.f32 %v553, %v621
        %v623 = vpop.f32.mrf.mxu0
        %624 = vdwg.mxu0
        %625 = vst [vmem:[%s223] sm:$0xff] %v596
        %626 = vst [vmem:[%s223 + $0x8] sm:$0xff] %v609
        %vm627 = vcmask 736256
        %628 = vst.msk [vmem:[%s223 + $0x10] sm:$0xff] %vm627, %v622
      $region36: #{inception_forward.1} parent=31 // pred_fallthru
        _
      %p629 = scmp.eq.s32.totalorder %s19, 1
      // Predicated region
      $region37: #{inception_forward.1} parent=31 // pred_check
        %p630 = pneg %p629
      $region38: #{inception_forward.1} parent=31 // pred_check_branch
        %632 = sbr.rel (%p630) target = $region40
      $region39: #{inception_forward.1} parent=31 // pred_region
        %v633 = vld [vmem:[%s206] sm:$0x7]
        %v634 = vld [vmem:[%s206] sm:$0xf]
        %636 = vst [vmem:[#allocation1] ss:$9 sm:$0xff] %v633
        %v637 = vld [vmem:[#allocation1] sm:$0xff]
        %v638 = vld [vmem:[#allocation1 + $0x9] sm:$0xff]
        %v639 = vld [vmem:[#allocation1 + $0x12] sm:$0xff]
        %643 = vst [vmem:[#allocation1] ss:$9 sm:$0xff] %v633
        %v644 = vld [vmem:[#allocation1] sm:$0xff]
        %v645 = vld [vmem:[#allocation1 + $0x9] sm:$0xff]
        %v646 = vld [vmem:[#allocation1 + $0x12] sm:$0xff]
        %v647 = vshll.u32 %v644, 16
        %v649 = vshll.u32 %v645, 16
        %v651 = vshll.u32 %v646, 16
        %653 = vrot.lane.b32.xlu0 %v647, 126
        %v654 = vpop.permute.xlu0 %653
        %655 = vrot.lane.b32.xlu0 %v649, 126
        %v656 = vpop.permute.xlu0 %655
        %657 = vrot.lane.b32.xlu0 %v651, 126
        %v658 = vpop.permute.xlu0 %657
        %vm659 = vcmask 1031168
        %v660 = vsel %vm659, %v654, %v656
        %v661 = vsel %vm659, %v656, %v658
        %s665 = scalar_lea.vmem [#allocation1], 1
        %666 = vst [vmem:[%s665] ss:$9 sm:$0xff] %v633
        %v667 = vld [vmem:[#allocation1] sm:$0xff]
        %v669 = vld [vmem:[#allocation1 + $0x9] sm:$0xff]
        %v671 = vld [vmem:[#allocation1 + $0x12] sm:$0xff]
        %673 = vrot.lane.b32.xlu0 %v667, 124
        %v674 = vpop.permute.xlu0 %673
        %675 = vrot.lane.b32.xlu0 %v669, 124
        %v676 = vpop.permute.xlu0 %675
        %677 = vrot.lane.b32.xlu0 %v671, 124
        %v678 = vpop.permute.xlu0 %677
        %vm679 = vcmask 1014784
        %v680 = vsel %vm679, %v674, %v676
        %v681 = vsel %vm679, %v676, %v678
        %683 = vst [vmem:[#allocation1] ss:$9 sm:$0xff] %v634
        %v684 = vld [vmem:[#allocation1] sm:$0xff]
        %v685 = vld [vmem:[#allocation1 + $0x9] sm:$0xff]
        %v686 = vld [vmem:[#allocation1 + $0x12] sm:$0xff]
        %v687 = vld [vmem:[#allocation1 + $0x1b] sm:$0xff]
        %v688 = vshll.u32 %v684, 16
        %v690 = vrot.slane %v688, 7
        %v691 = vshll.u32 %v685, 16
        %v693 = vrot.slane %v691, 7
        %v694 = vshll.u32 %v686, 16
        %v696 = vrot.slane %v694, 7
        %v697 = vshll.u32 %v687, 16
        %v699 = vrot.slane %v697, 7
        %700 = vrot.lane.b32.xlu0 %v690, 84
        %v701 = vpop.permute.xlu0 %700
        %702 = vrot.lane.b32.xlu0 %v693, 84
        %v703 = vpop.permute.xlu0 %702
        %704 = vrot.lane.b32.xlu0 %v696, 84
        %v705 = vpop.permute.xlu0 %704
        %706 = vrot.lane.b32.xlu0 %v699, 84
        %v707 = vpop.permute.xlu0 %706
        %vm708 = vcmask 687104
        %v709 = vsel %vm708, %v701, %v703
        %v710 = vsel %vm708, %v703, %v705
        %v711 = vsel %vm708, %v705, %v707
        %s715 = scalar_lea.vmem [#allocation1], 2
        %716 = vst [vmem:[%s715] ss:$9 sm:$0xff] %v634
        %v717 = vld [vmem:[#allocation1] sm:$0xff]
        %v719 = vld [vmem:[#allocation1 + $0x9] sm:$0xff]
        %v721 = vld [vmem:[#allocation1 + $0x12] sm:$0xff]
        %v723 = vld [vmem:[#allocation1 + $0x1b] sm:$0xff]
        %725 = vrot.lane.b32.xlu0 %v717, 82
        %v726 = vpop.permute.xlu0 %725
        %727 = vrot.lane.b32.xlu0 %v719, 82
        %v728 = vpop.permute.xlu0 %727
        %729 = vrot.lane.b32.xlu0 %v721, 82
        %v730 = vpop.permute.xlu0 %729
        %731 = vrot.lane.b32.xlu0 %v723, 82
        %v732 = vpop.permute.xlu0 %731
        %vm733 = vcmask 670720
        %v734 = vsel %vm733, %v726, %v728
        %v735 = vsel %vm733, %v728, %v730
        %v736 = vsel %vm733, %v730, %v732
        %737 = vst [vmem:[#allocation1] ss:$9 sm:$0xff] %v634
        %v738 = vld [vmem:[#allocation1] sm:$0xff]
        %v739 = vld [vmem:[#allocation1 + $0x9] sm:$0xff]
        %v740 = vld [vmem:[#allocation1 + $0x12] sm:$0xff]
        %v741 = vld [vmem:[#allocation1 + $0x1b] sm:$0xff]
        %v742 = vshll.u32 %v738, 16
        %v744 = vrot.slane %v742, 6
        %v745 = vshll.u32 %v739, 16
        %v747 = vrot.slane %v745, 6
        %v748 = vshll.u32 %v740, 16
        %v750 = vrot.slane %v748, 6
        %v751 = vshll.u32 %v741, 16
        %v753 = vrot.slane %v751, 6
        %754 = vrot.lane.b32.xlu0 %v744, 80
        %v755 = vpop.permute.xlu0 %754
        %756 = vrot.lane.b32.xlu0 %v747, 80
        %v757 = vpop.permute.xlu0 %756
        %758 = vrot.lane.b32.xlu0 %v750, 80
        %v759 = vpop.permute.xlu0 %758
        %760 = vrot.lane.b32.xlu0 %v753, 80
        %v761 = vpop.permute.xlu0 %760
        %vm762 = vcmask 654336
        %v763 = vsel %vm762, %v755, %v757
        %v764 = vsel %vm762, %v757, %v759
        %v765 = vsel %vm762, %v759, %v761
        %s769 = scalar_lea.vmem [#allocation1], 3
        %770 = vst [vmem:[%s769] ss:$9 sm:$0xff] %v634
        %v771 = vld [vmem:[#allocation1] sm:$0xff]
        %v773 = vld [vmem:[#allocation1 + $0x9] sm:$0xff]
        %v775 = vld [vmem:[#allocation1 + $0x12] sm:$0xff]
        %v777 = vld [vmem:[#allocation1 + $0x1b] sm:$0xff]
        %779 = vrot.lane.b32.xlu0 %v771, 40
        %v780 = vpop.permute.xlu0 %779
        %781 = vrot.lane.b32.xlu0 %v773, 40
        %v782 = vpop.permute.xlu0 %781
        %783 = vrot.lane.b32.xlu0 %v775, 40
        %v784 = vpop.permute.xlu0 %783
        %785 = vrot.lane.b32.xlu0 %v777, 40
        %v786 = vpop.permute.xlu0 %785
        %vm787 = vcmask 326656
        %v788 = vsel %vm787, %v780, %v782
        %v789 = vsel %vm787, %v782, %v784
        %v790 = vsel %vm787, %v784, %v786
        %791 = vst [vmem:[#allocation1] ss:$9 sm:$0xff] %v634
        %v792 = vld [vmem:[#allocation1] sm:$0xff]
        %v793 = vld [vmem:[#allocation1 + $0x9] sm:$0xff]
        %v794 = vld [vmem:[#allocation1 + $0x12] sm:$0xff]
        %v795 = vld [vmem:[#allocation1 + $0x1b] sm:$0xff]
        %v796 = vshll.u32 %v792, 16
        %v798 = vrot.slane %v796, 5
        %v799 = vshll.u32 %v793, 16
        %v801 = vrot.slane %v799, 5
        %v802 = vshll.u32 %v794, 16
        %v804 = vrot.slane %v802, 5
        %v805 = vshll.u32 %v795, 16
        %v807 = vrot.slane %v805, 5
        %808 = vrot.lane.b32.xlu0 %v798, 38
        %v809 = vpop.permute.xlu0 %808
        %810 = vrot.lane.b32.xlu0 %v801, 38
        %v811 = vpop.permute.xlu0 %810
        %812 = vrot.lane.b32.xlu0 %v804, 38
        %v813 = vpop.permute.xlu0 %812
        %814 = vrot.lane.b32.xlu0 %v807, 38
        %v815 = vpop.permute.xlu0 %814
        %vm816 = vcmask 310272
        %v817 = vsel %vm816, %v809, %v811
        %v818 = vsel %vm816, %v811, %v813
        %v819 = vsel %vm816, %v813, %v815
        %s823 = scalar_lea.vmem [#allocation1], 4
        %824 = vst [vmem:[%s823] ss:$9 sm:$0xff] %v634
        %v825 = vld [vmem:[#allocation1] sm:$0xff]
        %v827 = vld [vmem:[#allocation1 + $0x9] sm:$0xff]
        %v829 = vld [vmem:[#allocation1 + $0x12] sm:$0xff]
        %v831 = vld [vmem:[#allocation1 + $0x1b] sm:$0xff]
        %833 = vrot.lane.b32.xlu0 %v825, 36
        %v834 = vpop.permute.xlu0 %833
        %835 = vrot.lane.b32.xlu0 %v827, 36
        %v836 = vpop.permute.xlu0 %835
        %837 = vrot.lane.b32.xlu0 %v829, 36
        %v838 = vpop.permute.xlu0 %837
        %839 = vrot.lane.b32.xlu0 %v831, 36
        %v840 = vpop.permute.xlu0 %839
        %vm841 = vcmask 293888
        %v842 = vsel %vm841, %v834, %v836
        %v843 = vsel %vm841, %v836, %v838
        %v844 = vsel %vm841, %v838, %v840
        %vm845 = vcmask 1040384
        %vm846 = vsmask.f32 256
        %vm847 = vmand %vm845, %vm846
        %v848 = vsel %vm847, %v637, %v660
        %v849 = vsel %vm847, %v638, %v661
        %v850 = vsel %vm847, %v639, %v658
        %vm851 = vcmask 1040384
        %v854 = vsel %vm851, %v848, %v680
        %v858 = vsel %vm851, %v849, %v681
        %v862 = vsel %vm851, %v850, %v678
        %vm864 = vcmask 1041408
        %vm865 = vsmask.f32 1280
        %vm866 = vmand %vm864, %vm865
        %v867 = vsel %vm866, %v854, %v709
        %v868 = vsel %vm866, %v858, %v710
        %v869 = vsel %vm866, %v862, %v711
        %vm870 = vcmask 1041408
        %v873 = vsel %vm870, %v867, %v734
        %v877 = vsel %vm870, %v868, %v735
        %v881 = vsel %vm870, %v869, %v736
        %vm883 = vcmask 1042432
        %vm884 = vsmask.f32 2304
        %vm885 = vmand %vm883, %vm884
        %v886 = vsel %vm885, %v873, %v763
        %v887 = vsel %vm885, %v877, %v764
        %v888 = vsel %vm885, %v881, %v765
        %vm889 = vcmask 1042432
        %v892 = vsel %vm889, %v886, %v788
        %v896 = vsel %vm889, %v887, %v789
        %v900 = vsel %vm889, %v888, %v790
        %vm902 = vcmask 1043456
        %vm903 = vsmask.f32 3328
        %vm904 = vmand %vm902, %vm903
        %v905 = vsel %vm904, %v892, %v817
        %v906 = vsel %vm904, %v896, %v818
        %v907 = vsel %vm904, %v900, %v819
        %vm908 = vcmask 1043456
        %v911 = vsel %vm908, %v905, %v842
        %v914 = vsel %vm908, %v906, %v843
        %v917 = vsel %vm908, %v907, %v844
        %v918 = vld [vmem:[%s210] sm:$0xf]
        %v919 = vld [vmem:[%s214] sm:$0xff]
        %921 = vset.pattern.permute.xlu0 0
        %922 = vperm.xlu0 %921, %v919
        %v923 = vpop.permute.xlu0 %922
        %928 = vrot.lane.b32.xlu0 %v911, 105
        %v929 = vpop.permute.xlu0 %928
        %930 = vrot.lane.b32.xlu0 %v914, 105
        %v931 = vpop.permute.xlu0 %930
        %932 = vrot.lane.b32.xlu0 %v917, 105
        %v933 = vpop.permute.xlu0 %932
        %vm934 = vcmask 859136
        %v935 = vsel %vm934, %v929, %v931
        %v936 = vsel %vm934, %v931, %v933
        %vm937 = vcmask 72704
        %v939 = vsel %vm937, %v918, 0
        %vm941 = vcmask 1044480
        %v942 = vsel %vm908, 4294967295, 65535
        %v943 = vsel %vm941, %v942, 0
        %v945 = vand.u32 %v935, %v943
        %v948 = vand.u32 %v936, %v943
        %v951 = vand.u32 %v933, %v943
        %953 = vmatpush.bf16.msra.mxu0 0
        %954 = vmatpush.bf16.msra.mxu0 0
        %955 = vmatpush.bf16.msra.mxu0 0
        %956 = vmatpush.bf16.msra.mxu0 0
        %957 = vmatpush.bf16.msra.mxu0 0
        %958 = vmatpush.bf16.msra.mxu0 0
        %959 = vmatpush.bf16.msra.mxu0 0
        %960 = vmatpush.bf16.msra.mxu0 %v945
        %961 = vmatmul.bf16.gmra.mxu0 %v939
        %v962 = vpop.f32.mrf.mxu0
        %v963 = vadd.f32 %v923, %v962
        %v964 = vpop.f32.mrf.mxu0
        %965 = vdwg.mxu0
        %966 = vmatpush.bf16.msra.mxu0 0
        %967 = vmatpush.bf16.msra.mxu0 0
        %968 = vmatpush.bf16.msra.mxu0 0
        %969 = vmatpush.bf16.msra.mxu0 0
        %970 = vmatpush.bf16.msra.mxu0 0
        %971 = vmatpush.bf16.msra.mxu0 0
        %972 = vmatpush.bf16.msra.mxu0 0
        %973 = vmatpush.bf16.msra.mxu0 %v948
        %974 = vmatmul.bf16.gmra.mxu0 %v939
        %v975 = vpop.f32.mrf.mxu0
        %v976 = vadd.f32 %v923, %v975
        %v977 = vpop.f32.mrf.mxu0
        %978 = vdwg.mxu0
        %979 = vmatpush.bf16.msra.mxu0 0
        %980 = vmatpush.bf16.msra.mxu0 0
        %981 = vmatpush.bf16.msra.mxu0 0
        %982 = vmatpush.bf16.msra.mxu0 0
        %983 = vmatpush.bf16.msra.mxu0 0
        %984 = vmatpush.bf16.msra.mxu0 0
        %985 = vmatpush.bf16.msra.mxu0 0
        %986 = vmatpush.bf16.msra.mxu0 %v951
        %987 = vmatmul.bf16.gmra.mxu0 %v939
        %v988 = vpop.f32.mrf.mxu0
        %v989 = vadd.f32 %v923, %v988
        %v990 = vpop.f32.mrf.mxu0
        %991 = vdwg.mxu0
        %992 = vst [vmem:[%s223] sm:$0xff] %v963
        %993 = vst [vmem:[%s223 + $0x8] sm:$0xff] %v976
        %vm994 = vcmask 736256
        %995 = vst.msk [vmem:[%s223 + $0x10] sm:$0xff] %vm994, %v989
      $region40: #{inception_forward.1} parent=31 // pred_fallthru
        _
      %p996 = scmp.eq.s32.totalorder %s19, 2
      // Predicated region
      $region41: #{inception_forward.1} parent=31 // pred_check
        %p997 = pneg %p996
      $region42: #{inception_forward.1} parent=31 // pred_check_branch
        %999 = sbr.rel (%p997) target = $region44
      $region43: #{inception_forward.1} parent=31 // pred_region
        %v1000 = vld [vmem:[%s206] sm:$0x7]
        %v1001 = vld [vmem:[%s206] sm:$0xf]
        %v1002 = vld [vmem:[%s206 + $0x1] sm:$0x7]
        %1004 = vst [vmem:[#allocation1] ss:$9 sm:$0xff] %v1000
        %v1005 = vld [vmem:[#allocation1] sm:$0xff]
        %v1006 = vld [vmem:[#allocation1 + $0x9] sm:$0xff]
        %v1007 = vld [vmem:[#allocation1 + $0x12] sm:$0xff]
        %1011 = vst [vmem:[#allocation1] ss:$9 sm:$0xff] %v1000
        %v1012 = vld [vmem:[#allocation1] sm:$0xff]
        %v1013 = vld [vmem:[#allocation1 + $0x9] sm:$0xff]
        %v1014 = vld [vmem:[#allocation1 + $0x12] sm:$0xff]
        %v1015 = vshll.u32 %v1012, 16
        %v1017 = vshll.u32 %v1013, 16
        %v1019 = vshll.u32 %v1014, 16
        %1021 = vrot.lane.b32.xlu0 %v1015, 125
        %v1022 = vpop.permute.xlu0 %1021
        %1023 = vrot.lane.b32.xlu0 %v1017, 125
        %v1024 = vpop.permute.xlu0 %1023
        %1025 = vrot.lane.b32.xlu0 %v1019, 125
        %v1026 = vpop.permute.xlu0 %1025
        %vm1027 = vcmask 1022976
        %v1028 = vsel %vm1027, %v1022, %v1024
        %v1029 = vsel %vm1027, %v1024, %v1026
        %s1033 = scalar_lea.vmem [#allocation1], 1
        %1034 = vst [vmem:[%s1033] ss:$9 sm:$0xff] %v1000
        %v1035 = vld [vmem:[#allocation1] sm:$0xff]
        %v1037 = vld [vmem:[#allocation1 + $0x9] sm:$0xff]
        %v1039 = vld [vmem:[#allocation1 + $0x12] sm:$0xff]
        %1041 = vrot.lane.b32.xlu0 %v1035, 122
        %v1042 = vpop.permute.xlu0 %1041
        %1043 = vrot.lane.b32.xlu0 %v1037, 122
        %v1044 = vpop.permute.xlu0 %1043
        %1045 = vrot.lane.b32.xlu0 %v1039, 122
        %v1046 = vpop.permute.xlu0 %1045
        %vm1047 = vcmask 998400
        %v1048 = vsel %vm1047, %v1042, %v1044
        %v1049 = vsel %vm1047, %v1044, %v1046
        %1051 = vst [vmem:[#allocation1] ss:$9 sm:$0xff] %v1001
        %v1052 = vld [vmem:[#allocation1] sm:$0xff]
        %v1053 = vld [vmem:[#allocation1 + $0x9] sm:$0xff]
        %v1054 = vld [vmem:[#allocation1 + $0x12] sm:$0xff]
        %v1055 = vld [vmem:[#allocation1 + $0x1b] sm:$0xff]
        %v1056 = vshll.u32 %v1052, 16
        %v1058 = vrot.slane %v1056, 7
        %v1059 = vshll.u32 %v1053, 16
        %v1061 = vrot.slane %v1059, 7
        %v1062 = vshll.u32 %v1054, 16
        %v1064 = vrot.slane %v1062, 7
        %v1065 = vshll.u32 %v1055, 16
        %v1067 = vrot.slane %v1065, 7
        %1068 = vrot.lane.b32.xlu0 %v1058, 62
        %v1069 = vpop.permute.xlu0 %1068
        %1070 = vrot.lane.b32.xlu0 %v1061, 62
        %v1071 = vpop.permute.xlu0 %1070
        %1072 = vrot.lane.b32.xlu0 %v1064, 62
        %v1073 = vpop.permute.xlu0 %1072
        %1074 = vrot.lane.b32.xlu0 %v1067, 62
        %v1075 = vpop.permute.xlu0 %1074
        %vm1076 = vcmask 506880
        %v1077 = vsel %vm1076, %v1069, %v1071
        %v1078 = vsel %vm1076, %v1071, %v1073
        %v1079 = vsel %vm1076, %v1073, %v1075
        %s1083 = scalar_lea.vmem [#allocation1], 2
        %1084 = vst [vmem:[%s1083] ss:$9 sm:$0xff] %v1001
        %v1085 = vld [vmem:[#allocation1] sm:$0xff]
        %v1087 = vld [vmem:[#allocation1 + $0x9] sm:$0xff]
        %v1089 = vld [vmem:[#allocation1 + $0x12] sm:$0xff]
        %v1091 = vld [vmem:[#allocation1 + $0x1b] sm:$0xff]
        %1093 = vrot.lane.b32.xlu0 %v1085, 59
        %v1094 = vpop.permute.xlu0 %1093
        %1095 = vrot.lane.b32.xlu0 %v1087, 59
        %v1096 = vpop.permute.xlu0 %1095
        %1097 = vrot.lane.b32.xlu0 %v1089, 59
        %v1098 = vpop.permute.xlu0 %1097
        %1099 = vrot.lane.b32.xlu0 %v1091, 59
        %v1100 = vpop.permute.xlu0 %1099
        %vm1101 = vcmask 482304
        %v1102 = vsel %vm1101, %v1094, %v1096
        %v1103 = vsel %vm1101, %v1096, %v1098
        %v1104 = vsel %vm1101, %v1098, %v1100
        %1105 = vst [vmem:[#allocation1] ss:$9 sm:$0xff] %v1001
        %v1106 = vld [vmem:[#allocation1] sm:$0xff]
        %v1107 = vld [vmem:[#allocation1 + $0x9] sm:$0xff]
        %v1108 = vld [vmem:[#allocation1 + $0x12] sm:$0xff]
        %v1109 = vld [vmem:[#allocation1 + $0x1b] sm:$0xff]
        %v1110 = vshll.u32 %v1106, 16
        %v1112 = vrot.slane %v1110, 6
        %v1113 = vshll.u32 %v1107, 16
        %v1115 = vrot.slane %v1113, 6
        %v1116 = vshll.u32 %v1108, 16
        %v1118 = vrot.slane %v1116, 6
        %v1119 = vshll.u32 %v1109, 16
        %v1121 = vrot.slane %v1119, 6
        %1122 = vrot.lane.b32.xlu0 %v1112, 56
        %v1123 = vpop.permute.xlu0 %1122
        %1124 = vrot.lane.b32.xlu0 %v1115, 56
        %v1125 = vpop.permute.xlu0 %1124
        %1126 = vrot.lane.b32.xlu0 %v1118, 56
        %v1127 = vpop.permute.xlu0 %1126
        %1128 = vrot.lane.b32.xlu0 %v1121, 56
        %v1129 = vpop.permute.xlu0 %1128
        %vm1130 = vcmask 457728
        %v1131 = vsel %vm1130, %v1123, %v1125
        %v1132 = vsel %vm1130, %v1125, %v1127
        %v1133 = vsel %vm1130, %v1127, %v1129
        %s1138 = scalar_lea.vmem [#allocation1], 3
        %1139 = vst [vmem:[%s1138] ss:$9 sm:$0xff] %v1002
        %v1140 = vld [vmem:[#allocation1] sm:$0xff]
        %v1142 = vld [vmem:[#allocation1 + $0x9] sm:$0xff]
        %v1144 = vld [vmem:[#allocation1 + $0x12] sm:$0xff]
        %1146 = vrot.lane.b32.xlu0 %v1140, 124
        %v1147 = vpop.permute.xlu0 %1146
        %1148 = vrot.lane.b32.xlu0 %v1142, 124
        %v1149 = vpop.permute.xlu0 %1148
        %1150 = vrot.lane.b32.xlu0 %v1144, 124
        %v1151 = vpop.permute.xlu0 %1150
        %vm1152 = vcmask 1014784
        %v1153 = vsel %vm1152, %v1147, %v1149
        %v1154 = vsel %vm1152, %v1149, %v1151
        %1155 = vst [vmem:[#allocation1] ss:$9 sm:$0xff] %v1002
        %v1156 = vld [vmem:[#allocation1] sm:$0xff]
        %v1157 = vld [vmem:[#allocation1 + $0x9] sm:$0xff]
        %v1158 = vld [vmem:[#allocation1 + $0x12] sm:$0xff]
        %v1159 = vshll.u32 %v1156, 16
        %v1161 = vrot.slane %v1159, 5
        %v1162 = vshll.u32 %v1157, 16
        %v1164 = vrot.slane %v1162, 5
        %v1165 = vshll.u32 %v1158, 16
        %v1167 = vrot.slane %v1165, 5
        %1168 = vrot.lane.b32.xlu0 %v1161, 121
        %v1169 = vpop.permute.xlu0 %1168
        %1170 = vrot.lane.b32.xlu0 %v1164, 121
        %v1171 = vpop.permute.xlu0 %1170
        %1172 = vrot.lane.b32.xlu0 %v1167, 121
        %v1173 = vpop.permute.xlu0 %1172
        %vm1174 = vcmask 990208
        %v1175 = vsel %vm1174, %v1169, %v1171
        %v1176 = vsel %vm1174, %v1171, %v1173
        %s1180 = scalar_lea.vmem [#allocation1], 4
        %1181 = vst [vmem:[%s1180] ss:$9 sm:$0xff] %v1002
        %v1182 = vld [vmem:[#allocation1] sm:$0xff]
        %v1184 = vld [vmem:[#allocation1 + $0x9] sm:$0xff]
        %v1186 = vld [vmem:[#allocation1 + $0x12] sm:$0xff]
        %1188 = vrot.lane.b32.xlu0 %v1182, 118
        %v1189 = vpop.permute.xlu0 %1188
        %1190 = vrot.lane.b32.xlu0 %v1184, 118
        %v1191 = vpop.permute.xlu0 %1190
        %1192 = vrot.lane.b32.xlu0 %v1186, 118
        %v1193 = vpop.permute.xlu0 %1192
        %vm1194 = vcmask 965632
        %v1195 = vsel %vm1194, %v1189, %v1191
        %v1196 = vsel %vm1194, %v1191, %v1193
        %vm1197 = vcmask 1040384
        %vm1198 = vsmask.f32 256
        %vm1199 = vmand %vm1197, %vm1198
        %v1200 = vsel %vm1199, %v1005, %v1028
        %v1201 = vsel %vm1199, %v1006, %v1029
        %v1202 = vsel %vm1199, %v1007, %v1026
        %vm1203 = vcmask 1040384
        %v1206 = vsel %vm1203, %v1200, %v1048
        %v1210 = vsel %vm1203, %v1201, %v1049
        %v1214 = vsel %vm1203, %v1202, %v1046
        %vm1216 = vcmask 1041408
        %vm1217 = vsmask.f32 1280
        %vm1218 = vmand %vm1216, %vm1217
        %v1219 = vsel %vm1218, %v1206, %v1077
        %v1220 = vsel %vm1218, %v1210, %v1078
        %v1221 = vsel %vm1218, %v1214, %v1079
        %vm1222 = vcmask 1041408
        %v1225 = vsel %vm1222, %v1219, %v1102
        %v1229 = vsel %vm1222, %v1220, %v1103
        %v1233 = vsel %vm1222, %v1221, %v1104
        %vm1235 = vcmask 1042432
        %vm1236 = vsmask.f32 2304
        %vm1237 = vmand %vm1235, %vm1236
        %v1238 = vsel %vm1237, %v1225, %v1131
        %v1239 = vsel %vm1237, %v1229, %v1132
        %v1240 = vsel %vm1237, %v1233, %v1133
        %vm1241 = vcmask 1042432
        %v1244 = vsel %vm1241, %v1238, %v1153
        %v1248 = vsel %vm1241, %v1239, %v1154
        %v1252 = vsel %vm1241, %v1240, %v1151
        %vm1254 = vcmask 1043456
        %vm1255 = vsmask.f32 3328
        %vm1256 = vmand %vm1254, %vm1255
        %v1257 = vsel %vm1256, %v1244, %v1175
        %v1258 = vsel %vm1256, %v1248, %v1176
        %v1259 = vsel %vm1256, %v1252, %v1173
        %vm1260 = vcmask 1043456
        %v1263 = vsel %vm1260, %v1257, %v1195
        %v1266 = vsel %vm1260, %v1258, %v1196
        %v1269 = vsel %vm1260, %v1259, %v1193
        %v1270 = vld [vmem:[%s210] sm:$0xf]
        %v1271 = vld [vmem:[%s214] sm:$0xff]
        %1273 = vset.pattern.permute.xlu0 0
        %1274 = vperm.xlu0 %1273, %v1271
        %v1275 = vpop.permute.xlu0 %1274
        %vm1277 = vcmask 72704
        %v1279 = vsel %vm1277, %v1270, 0
        %vm1281 = vcmask 1044480
        %v1282 = vsel %vm1260, 4294967295, 65535
        %v1283 = vsel %vm1281, %v1282, 0
        %v1284 = vand.u32 %v1263, %v1283
        %v1286 = vand.u32 %v1266, %v1283
        %v1288 = vand.u32 %v1269, %v1283
        %1290 = vmatpush.bf16.msra.mxu0 0
        %1291 = vmatpush.bf16.msra.mxu0 0
        %1292 = vmatpush.bf16.msra.mxu0 0
        %1293 = vmatpush.bf16.msra.mxu0 0
        %1294 = vmatpush.bf16.msra.mxu0 0
        %1295 = vmatpush.bf16.msra.mxu0 0
        %1296 = vmatpush.bf16.msra.mxu0 0
        %1297 = vmatpush.bf16.msra.mxu0 %v1284
        %1298 = vmatmul.bf16.gmra.mxu0 %v1279
        %v1299 = vpop.f32.mrf.mxu0
        %v1300 = vadd.f32 %v1275, %v1299
        %v1301 = vpop.f32.mrf.mxu0
        %1302 = vdwg.mxu0
        %1303 = vmatpush.bf16.msra.mxu0 0
        %1304 = vmatpush.bf16.msra.mxu0 0
        %1305 = vmatpush.bf16.msra.mxu0 0
        %1306 = vmatpush.bf16.msra.mxu0 0
        %1307 = vmatpush.bf16.msra.mxu0 0
        %1308 = vmatpush.bf16.msra.mxu0 0
        %1309 = vmatpush.bf16.msra.mxu0 0
        %1310 = vmatpush.bf16.msra.mxu0 %v1286
        %1311 = vmatmul.bf16.gmra.mxu0 %v1279
        %v1312 = vpop.f32.mrf.mxu0
        %v1313 = vadd.f32 %v1275, %v1312
        %v1314 = vpop.f32.mrf.mxu0
        %1315 = vdwg.mxu0
        %1316 = vmatpush.bf16.msra.mxu0 0
        %1317 = vmatpush.bf16.msra.mxu0 0
        %1318 = vmatpush.bf16.msra.mxu0 0
        %1319 = vmatpush.bf16.msra.mxu0 0
        %1320 = vmatpush.bf16.msra.mxu0 0
        %1321 = vmatpush.bf16.msra.mxu0 0
        %1322 = vmatpush.bf16.msra.mxu0 0
        %1323 = vmatpush.bf16.msra.mxu0 %v1288
        %1324 = vmatmul.bf16.gmra.mxu0 %v1279
        %v1325 = vpop.f32.mrf.mxu0
        %v1326 = vadd.f32 %v1275, %v1325
        %v1327 = vpop.f32.mrf.mxu0
        %1328 = vdwg.mxu0
        %1329 = vst [vmem:[%s223] sm:$0xff] %v1300
        %1330 = vst [vmem:[%s223 + $0x8] sm:$0xff] %v1313
        %vm1331 = vcmask 736256
        %1332 = vst.msk [vmem:[%s223 + $0x10] sm:$0xff] %vm1331, %v1326
      $region44: #{inception_forward.1} parent=31 // pred_fallthru
        _
      %p1333 = scmp.lt.s32.totalorder %s18, 1
      %s1334 = scalar_select %p1333, %s18, 1
      %p1335 = scmp.lt.s32.totalorder %s19, 2
      %s1336 = scalar_select %p1335, %s19, 2
      %s1337 = smul.addr %s1336, 3
      %s1338 = smul.addr %s1334, 9
      %s1339 = sadd.s32 %s1337, %s1338
      %s1340 = smul.addr %s1339, 8
      %s1341 = scalar_lea.vmem %s3, %s1340
      // Predicated region
      $region45: #{inception_forward.1} parent=31 // pred_check
        %p1342 = pneg %p124
      $region46: #{inception_forward.1} parent=31 // pred_check_branch
        %1344 = sbr.rel (%p1342) target = $region48
      $region47: #{inception_forward.1} parent=31 // pred_region
        _
      $region48: #{inception_forward.1} parent=31 // pred_fallthru
        _
    $region32: #{inception_forward.1} parent=5 // pred_fallthru
      _
    %p1345 = scmp.le.s32.totalorder 2, %s9
    // Predicated region
    $region49: #{inception_forward.1} parent=5 // pred_check
      %p1346 = pneg %p1345
    $region50: #{inception_forward.1} parent=5 // pred_check_branch
      %1348 = sbr.rel (%p1346) target = $region52
    $region51: #{inception_forward.1} parent=5 // pred_region
      %s1349 = ssub.s32 %s9, 2
      // Predicated region
      $region53: #{inception_forward.1} parent=51 // pred_check
        %p1350 = pneg %p130
      $region54: #{inception_forward.1} parent=51 // pred_check_branch
        %1352 = sbr.rel (%p1350) target = $region56
      $region55: #{inception_forward.1} parent=51 // pred_region
        %p1353 = scmp.lt.s32.totalorder %s20, 1
        %s1354 = scalar_select %p1353, %s20, 1
        %p1355 = scmp.lt.s32.totalorder %s21, 2
        %s1356 = scalar_select %p1355, %s21, 2
        %s1357 = smul.addr %s1356, 3
        %s1358 = smul.addr %s1354, 9
        %s1359 = sadd.s32 %s1357, %s1358
        %s1360 = smul.addr %s1359, 8
        %s1361 = scalar_lea.vmem %s3, %s1360
      $region56: #{inception_forward.1} parent=51 // pred_fallthru
        _
    $region52: #{inception_forward.1} parent=5 // pred_fallthru
      _
  $region6: #{inception_forward.1} parent=0 // loop_footer
    %s13 = sadd.s32 1, %s9
  $region7: #{inception_forward.1} parent=0 // loop_footer_branch
    %8 = sbr.rel target = $region3
  $region8: #{inception_forward.1} parent=0 // loop_exit
    _

</llo_original>
